<compile_context>
chip_gen: v5e
topology: v5e:2x2
jax: 0.10.0
libtpu: 0.0.40
codegen_flags: <defaults>
</compile_context>

<pallas_src>
import functools

import jax
import jax.numpy as jnp
from jax.experimental import pallas as pl
from jax.experimental.pallas import tpu as pltpu


def _pick_seq_chunk(seq):
    """SEQ-chunk size used inside the kernel so f32 temporaries stay
    chunk-sized instead of block-sized.  Chunks are kept 128-lane aligned so
    score-chunk concatenation / att slicing never needs a relayout; fall back
    to a single chunk for small or odd SEQ (the common pooling case)."""
    for n in (8, 4, 2):
        if seq % (128 * n) == 0:
            return seq // n
    return seq


def _attention_core(emb_ref, w_ref, b_ref, *, seq_chunk):
    TB, SEQ, DIM = emb_ref.shape
    w = w_ref[...]                                   # (1, DIM), native dtype
    b = b_ref[0].astype(jnp.float32)                 # scalar from SMEM
    n_chunks = SEQ // seq_chunk

    # Linear(DIM -> 1): VPU broadcast-multiply + lane reduction.  Multiply in
    # the native dtype; the upcast is folded into the f32 reduction, and SEQ
    # is chunked so no (TB, SEQ, DIM)-sized f32 temporary is materialized.
    chunks = []
    for c in range(n_chunks):
        emb_c = emb_ref[:, c * seq_chunk:(c + 1) * seq_chunk, :]
        chunks.append(jnp.sum(emb_c * w, axis=-1, dtype=jnp.float32))
    scores = (chunks[0] if n_chunks == 1
              else jnp.concatenate(chunks, axis=-1)) + b        # (TB, SEQ) f32

    # tanh + numerically stable softmax over SEQ, all in f32 (EUP slot).
    u = jnp.tanh(scores)
    m = jnp.max(u, axis=-1, keepdims=True)
    e = jnp.exp(u - m)
    denom = jnp.sum(e, axis=-1, keepdims=True)
    att = e * pl.reciprocal(denom, approx=True)                 # (TB, SEQ) f32

    # Weighted sum over SEQ: chunked f32 accumulation (VPU/XLU).  att stays
    # f32 for the multiply (no bf16 quantization of the softmax weights).
    acc = jnp.zeros((TB, DIM), jnp.float32)
    for c in range(n_chunks):
        emb_c = emb_ref[:, c * seq_chunk:(c + 1) * seq_chunk, :]
        att_c = att[:, c * seq_chunk:(c + 1) * seq_chunk]
        acc = acc + jnp.sum(emb_c.astype(jnp.float32) * att_c[..., None],
                            axis=1)
    return acc, att


def _attention_kernel(emb_ref, w_ref, b_ref, out_ref, *, seq_chunk):
    out, _ = _attention_core(emb_ref, w_ref, b_ref, seq_chunk=seq_chunk)
    out_ref[...] = out.astype(out_ref.dtype)


def _attention_kernel_with_weights(emb_ref, w_ref, b_ref, out_ref, att_ref, *,
                                   seq_chunk):
    out, att = _attention_core(emb_ref, w_ref, b_ref, seq_chunk=seq_chunk)
    out_ref[...] = out.astype(out_ref.dtype)
    att_ref[...] = att.astype(att_ref.dtype)


def attention_forward(embeddings, weight, bias, *, return_weights=False,
                      tile_b=None):
    """embeddings: (BS, SEQ, DIM); weight: (1, DIM) [PyTorch Linear layout];
    bias: (1,)."""
    BS, SEQ, DIM = embeddings.shape
    weight = jnp.asarray(weight, embeddings.dtype).reshape(1, DIM)
    bias = jnp.asarray(bias, jnp.float32).reshape(-1)
    itemsize = jnp.dtype(embeddings.dtype).itemsize
    seq_chunk = _pick_seq_chunk(SEQ)

    # ---------- VMEM accounting & per-generation limit ----------------------
    try:
        vmem_cap = int(pltpu.get_tpu_info().vmem_capacity_bytes)
    except Exception:
        vmem_cap = 64 * 1024 * 1024          # conservative (v7x per-core size)
    vmem_limit = (vmem_cap * 3) // 4         # ~48 MiB v7x, ~96 MiB v5e/v6e
    headroom = 4 * 1024 * 1024               # compiler-internal scratch

    per_row = (2 * SEQ * DIM * itemsize      # input block, double-buffered
               + 2 * DIM * itemsize          # output block, double-buffered
               + (2 * SEQ * itemsize if return_weights else 0)
               + 3 * seq_chunk * DIM * 4     # chunk-sized kernel temporaries
               + 8 * SEQ * 4 + 2 * DIM * 4)  # f32 scores/softmax/accumulator
    usable = max(vmem_limit - headroom, per_row)

    if tile_b is None:
        tile_b = max(1, usable // per_row)
    tile_b = int(min(tile_b, BS))
    if BS >= 16:
        # Keep >= 2 grid steps so both of v7x's TensorCores get work.
        tile_b = min(tile_b, max(8, ((BS // 2) // 8) * 8))
    if tile_b < BS:
        tile_b = max(8, (tile_b // 8) * 8)   # output block rows: multiple of 8

    # Re-check after the multiple-of-8 rounding (rounding-up hazard): if the
    # block no longer fits the limit, escalate toward physical VMEM.
    needed = tile_b * per_row + headroom
    if needed > vmem_limit:
        vmem_limit = min((vmem_cap * 9) // 10, needed)
        # TODO(synk): shapes where even an 8-row block exceeds VMEM need a
        # second ("arbitrary") grid axis over SEQ with an online softmax.

    # Ragged last block: no jnp.pad — OOB reads are per-row garbage whose
    # writes are masked; all math is per-row so valid rows are unaffected.
    grid = (pl.cdiv(BS, tile_b),)

    in_specs = [
        pl.BlockSpec((tile_b, SEQ, DIM), lambda i: (i, 0, 0)),
        pl.BlockSpec((1, DIM), lambda i: (0, 0)),
        pl.BlockSpec(memory_space=pltpu.MemorySpace.SMEM),       # scalar bias
    ]
    cparams = pltpu.CompilerParams(
        dimension_semantics=("parallel",),
        vmem_limit_bytes=int(vmem_limit),
    )
    out_bytes = BS * DIM * itemsize + (BS * SEQ * itemsize if return_weights
                                       else 0)
    cost = pl.CostEstimate(
        flops=4 * BS * SEQ * DIM,
        transcendentals=2 * BS * SEQ,
        bytes_accessed=BS * SEQ * DIM * itemsize + DIM * itemsize + out_bytes,
    )

    if return_weights:
        kernel = functools.partial(_attention_kernel_with_weights,
                                   seq_chunk=seq_chunk)
        out, att = pl.pallas_call(
            kernel,
            out_shape=(
                jax.ShapeDtypeStruct((BS, DIM), embeddings.dtype),
                jax.ShapeDtypeStruct((BS, SEQ), embeddings.dtype),
            ),
            grid=grid,
            in_specs=in_specs,
            out_specs=(
                pl.BlockSpec((tile_b, DIM), lambda i: (i, 0)),
                pl.BlockSpec((tile_b, SEQ), lambda i: (i, 0)),
            ),
            compiler_params=cparams,
            cost_estimate=cost,
        )(embeddings, weight, bias)
        return out, att

    kernel = functools.partial(_attention_kernel, seq_chunk=seq_chunk)
    out = pl.pallas_call(
        kernel,
        out_shape=jax.ShapeDtypeStruct((BS, DIM), embeddings.dtype),
        grid=grid,
        in_specs=in_specs,
        out_specs=pl.BlockSpec((tile_b, DIM), lambda i: (i, 0)),
        compiler_params=cparams,
        cost_estimate=cost,
    )(embeddings, weight, bias)
    return out


def _reference(embeddings, weight, bias):
    scores = jnp.einsum("bsd,od->bs", embeddings, weight) + bias[0]
    u = jnp.tanh(scores)
    att = jax.nn.softmax(u, axis=-1)
    return jnp.einsum("bs,bsd->bd", att, embeddings), att


if __name__ == "__main__":
    # --- small shape consistent with the module: batch=2, seq=8, hidden=32 ---
    BS, SEQ, DIM = 2, 8, 32

    key = jax.random.PRNGKey(0)
    k_emb, k_w, k_b = jax.random.split(key, 3)

    embeddings = jax.random.normal(k_emb, (BS, SEQ, DIM), dtype=jnp.float32)

    # deterministic init mimicking nn.Linear(DIM, 1): U(-1/sqrt(DIM), 1/sqrt(DIM))
    bound = 1.0 / (DIM ** 0.5)
    weight = jax.random.uniform(k_w, (1, DIM), jnp.float32, -bound, bound)
    bias = jax.random.uniform(k_b, (1,), jnp.float32, -bound, bound)

    out, att = attention_forward(embeddings, weight, bias, return_weights=True)
    out = jax.block_until_ready(out)
    att = jax.block_until_ready(att)

    ref_out, ref_att = _reference(embeddings, weight, bias)
    assert out.shape == (BS, DIM) and att.shape == (BS, SEQ)
    assert jnp.allclose(out, ref_out, atol=2e-3, rtol=2e-3)
    assert jnp.allclose(att, ref_att, atol=2e-3, rtol=2e-3)

    # --- second check: multi-step grid with a RAGGED last batch block (no pad)
    #     + the no-weights (single-output) variant ---
    BS2, SEQ2, DIM2 = 33, 8, 128
    k_emb2, k_w2 = jax.random.split(k_emb)
    emb2 = jax.random.normal(k_emb2, (BS2, SEQ2, DIM2), dtype=jnp.float32)
    bound2 = 1.0 / (DIM2 ** 0.5)
    w2 = jax.random.uniform(k_w2, (1, DIM2), jnp.float32, -bound2, bound2)
    out2 = attention_forward(emb2, w2, bias, tile_b=8)   # grid of 5 tiles
    out2 = jax.block_until_ready(out2)
    ref_out2, _ = _reference(emb2, w2, bias)
    assert out2.shape == (BS2, DIM2)
    assert jnp.allclose(out2, ref_out2, atol=2e-3, rtol=2e-3)

    print("KERNEL_OK")
</pallas_src>

<mosaic_0001>
module attributes {stable_mosaic.version = 11 : i64} {
  func.func @_attention_kernel_with_weights(%arg0: i32, %arg1: memref<2x8x32xf32, #tpu.memory_space<vmem>>, %arg2: memref<1x32xf32, #tpu.memory_space<vmem>>, %arg3: memref<1xf32, #tpu.memory_space<smem>>, %arg4: memref<2x32xf32, #tpu.memory_space<vmem>>, %arg5: memref<2x8xf32, #tpu.memory_space<vmem>>) attributes {dimension_semantics = [#tpu.dimension_semantics<parallel>], iteration_bounds = array<i64: 1>, scalar_prefetch = 0 : i64, scratch_operands = 0 : i64, tpu.core_type = #tpu.core_type<tc>, window_params = [{transform_indices = @transform_0, window_bounds = array<i64: 2, 8, 32>}, {pipeline_mode = #tpu.pipeline_mode<synchronous>, transform_indices = @transform_1, window_bounds = array<i64: 1, 32>}, {transform_indices = @transform_2, window_bounds = array<i64: 1>}, {transform_indices = @transform_3, window_bounds = array<i64: 2, 32>}, {transform_indices = @transform_4, window_bounds = array<i64: 2, 8>}]} {
    %c0 = arith.constant 0 : index
    %c0_0 = arith.constant 0 : index
    %0 = vector.load %arg2[%c0, %c0_0] : memref<1x32xf32, #tpu.memory_space<vmem>>, vector<1x32xf32>
    %c0_1 = arith.constant 0 : index
    %1 = memref.load %arg3[%c0_1] : memref<1xf32, #tpu.memory_space<smem>>
    %c0_2 = arith.constant 0 : index
    %c0_3 = arith.constant 0 : index
    %c0_4 = arith.constant 0 : index
    %2 = vector.load %arg1[%c0_2, %c0_3, %c0_4] : memref<2x8x32xf32, #tpu.memory_space<vmem>>, vector<2x8x32xf32>
    %3 = vector.shape_cast %0 : vector<1x32xf32> to vector<1x1x32xf32>
    %4 = vector.broadcast %3 : vector<1x1x32xf32> to vector<2x8x32xf32>
    %5 = arith.mulf %2, %4 : vector<2x8x32xf32>
    %cst = arith.constant dense<0.000000e+00> : vector<2x8xf32>
    %6 = vector.multi_reduction <add>, %5, %cst [2] : vector<2x8x32xf32> to vector<2x8xf32>
    %7 = vector.broadcast %1 : f32 to vector<2x8xf32>
    %8 = arith.addf %6, %7 : vector<2x8xf32>
    %9 = math.tanh %8 : vector<2x8xf32>
    %cst_5 = arith.constant dense<0xFF800000> : vector<2xf32>
    %10 = vector.multi_reduction <maximumf>, %9, %cst_5 [1] : vector<2x8xf32> to vector<2xf32>
    %11 = vector.shape_cast %10 : vector<2xf32> to vector<2x1xf32>
    %12 = vector.broadcast %11 : vector<2x1xf32> to vector<2x8xf32>
    %13 = arith.subf %9, %12 : vector<2x8xf32>
    %14 = math.exp %13 : vector<2x8xf32>
    %cst_6 = arith.constant dense<0.000000e+00> : vector<2xf32>
    %15 = vector.multi_reduction <add>, %14, %cst_6 [1] : vector<2x8xf32> to vector<2xf32>
    %16 = vector.shape_cast %15 : vector<2xf32> to vector<2x1xf32>
    %17 = tpu.reciprocal %16 {approx = true} : vector<2x1xf32> -> vector<2x1xf32>
    %18 = vector.broadcast %17 : vector<2x1xf32> to vector<2x8xf32>
    %19 = arith.mulf %14, %18 : vector<2x8xf32>
    %cst_7 = arith.constant 0.000000e+00 : f32
    %20 = vector.broadcast %cst_7 : f32 to vector<2x32xf32>
    %c0_8 = arith.constant 0 : index
    %c0_9 = arith.constant 0 : index
    %c0_10 = arith.constant 0 : index
    %21 = vector.load %arg1[%c0_8, %c0_9, %c0_10] : memref<2x8x32xf32, #tpu.memory_space<vmem>>, vector<2x8x32xf32>
    %22 = vector.shape_cast %19 : vector<2x8xf32> to vector<2x8x1xf32>
    %23 = vector.broadcast %22 : vector<2x8x1xf32> to vector<2x8x32xf32>
    %24 = arith.mulf %21, %23 : vector<2x8x32xf32>
    %cst_11 = arith.constant dense<0.000000e+00> : vector<2x32xf32>
    %25 = vector.multi_reduction <add>, %24, %cst_11 [1] : vector<2x8x32xf32> to vector<2x32xf32>
    %26 = arith.addf %20, %25 : vector<2x32xf32>
    %c0_12 = arith.constant 0 : index
    %c0_13 = arith.constant 0 : index
    %27 = vector.load %arg4[%c0_12, %c0_13] : memref<2x32xf32, #tpu.memory_space<vmem>>, vector<2x32xf32>
    tpu.vector_store %arg4[%c0_12, %c0_13], %26 {strides = array<i32>} : memref<2x32xf32, #tpu.memory_space<vmem>>, vector<2x32xf32>,
    %c0_14 = arith.constant 0 : index
    %c0_15 = arith.constant 0 : index
    %28 = vector.load %arg5[%c0_14, %c0_15] : memref<2x8xf32, #tpu.memory_space<vmem>>, vector<2x8xf32>
    tpu.vector_store %arg5[%c0_14, %c0_15], %19 {strides = array<i32>} : memref<2x8xf32, #tpu.memory_space<vmem>>, vector<2x8xf32>,
    return
  }
  func.func @transform_0(%arg0: i32) -> (i32, i32, i32) {
    %c0_i32 = arith.constant 0 : i32
    %c0_i32_0 = arith.constant 0 : i32
    %c0_i32_1 = arith.constant 0 : i32
    return %arg0, %c0_i32, %c0_i32_0 : i32, i32, i32
  }
  func.func @transform_1(%arg0: i32) -> (i32, i32) {
    %c0_i32 = arith.constant 0 : i32
    %c0_i32_0 = arith.constant 0 : i32
    %c0_i32_1 = arith.constant 0 : i32
    return %c0_i32, %c0_i32_0 : i32, i32
  }
  func.func @transform_2(%arg0: i32) -> i32 {
    %c0_i32 = arith.constant 0 : i32
    %c0_i32_0 = arith.constant 0 : i32
    return %c0_i32 : i32
  }
  func.func @transform_3(%arg0: i32) -> (i32, i32) {
    %c0_i32 = arith.constant 0 : i32
    %c0_i32_0 = arith.constant 0 : i32
    return %arg0, %c0_i32 : i32, i32
  }
  func.func @transform_4(%arg0: i32) -> (i32, i32) {
    %c0_i32 = arith.constant 0 : i32
    %c0_i32_0 = arith.constant 0 : i32
    return %arg0, %c0_i32 : i32, i32
  }
}

</mosaic_0001>

<llo_original>
// kernel: tpu_custom_call.1
$region0: #{tpu_custom_call.1}
  #allocation0 [shape = 'u32[]', space=smem, size = 0x4, offset = 0x4, fixed_abs, tag = 'smem constant byte address 0x4 - core index']
  #allocation1 [shape = 'u32[72,128]{1,0:T(1,128)}', space=vmem, size = 0x9000, scoped, tag = 'internal scratch']
  #allocation2 [shape = 'f32[1]{0:T(128)S(6)}', space=smem, size = 0x200, scoped, tag = 'scoped memory for tpu_custom_call.1']
  %s0 = inlined_call_operand.hbm [shape: f32[2,8,32], index: 0, kind: input, shape index: {}]
  %s1 = inlined_call_operand.vmem [shape: f32[1,32], index: 1, kind: input, shape index: {}]
  %s2 = inlined_call_operand.<no memory space> [shape: f32[1], index: 2, kind: input, shape index: {}]
  %s3 = inlined_call_operand.hbm [shape: f32[2,32], index: 3, kind: output, shape index: {0}]
  %s4 = inlined_call_operand.hbm [shape: f32[2,8], index: 4, kind: output, shape index: {1}]
  %5 = xla_tuple %s3, %s4
  %s6 = sld [smem:[#allocation0]]
  $region34: #{tpu_custom_call.1} parent=0
    _
  %s8 = ssub.s32 1, %s6
  %s9 = scalar_select 0, %s8, %s6
  %10 = sst [smem:[#allocation2]] %s2
  $region1: #{tpu_custom_call.1} parent=0
    #allocation3 [shape = 'u8[8192]{0}', space=vmem, size = 0x2000, scoped, tag = 'input window, operand 0, single buffered']
    #allocation4 [shape = 's32[1]{0}', space=sflag, size = 0x4, scoped, tag = 'scoped memory for tpu_custom_call.1']
    #allocation5 [shape = 's32[1]{0}', space=sflag, size = 0x4, scoped, tag = 'scoped memory for tpu_custom_call.1']
    #allocation6 [shape = 'u8[1024]{0}', space=vmem, size = 0x400, scoped, tag = 'output window, operand 0, single buffered']
    #allocation7 [shape = 'u8[1024]{0}', space=vmem, size = 0x400, scoped, tag = 'output window, operand 1, single buffered']
    #allocation8 [shape = 's32[1]{0}', space=sflag, size = 0x4, scoped, tag = 'scoped memory for tpu_custom_call.1']
    %11 = vsyncpa [#allocation4], 0
    %12 = vsyncpa [#allocation5], 0
    %13 = vsyncpa [#allocation8], 0
    // Predicated region
    $region2: #{tpu_custom_call.1} parent=1 // pred_check
      _
    $region3: #{tpu_custom_call.1} parent=1 // pred_check_branch
      %15 = sbr.rel (0) target = $region5
    $region4: #{tpu_custom_call.1} parent=1 // pred_region
      %17 = vsyncadd [#allocation4], 0
      %s18 = sshll.u32 %s0, 4
      %s19 = int_to_ptr.hbm [resolvable:$true] %s18
      %s20 = sshll.u32 [#allocation3], 4
      %s21 = int_to_ptr.vmem [resolvable:$true] %s20
      %26 = dma.hbm_to_vmem [thread:$0]  %s19, 256, %s21, [#allocation4], 128, 128, 8
    $region5: #{tpu_custom_call.1} parent=1 // pred_fallthru
      _
    // Predicated region
    $region6: #{tpu_custom_call.1} parent=1 // pred_check
      _
    $region7: #{tpu_custom_call.1} parent=1 // pred_check_branch
      %28 = sbr.rel (0) target = $region9
    $region8: #{tpu_custom_call.1} parent=1 // pred_region
      _
    $region9: #{tpu_custom_call.1} parent=1 // pred_fallthru
      _
    // Predicated region
    $region10: #{tpu_custom_call.1} parent=1 // pred_check
      _
    $region11: #{tpu_custom_call.1} parent=1 // pred_check_branch
      %30 = sbr.rel (0) target = $region13
    $region12: #{tpu_custom_call.1} parent=1 // pred_region
      _
    $region13: #{tpu_custom_call.1} parent=1 // pred_fallthru
      _
    // Predicated region
    $region14: #{tpu_custom_call.1} parent=1 // pred_check
      _
    $region15: #{tpu_custom_call.1} parent=1 // pred_check_branch
      %32 = sbr.rel (0) target = $region17
    $region16: #{tpu_custom_call.1} parent=1 // pred_region
      %34 = dma.done [#allocation4], 256
    $region17: #{tpu_custom_call.1} parent=1 // pred_fallthru
      _
    %v35 = vld [vmem:[%s1] sm:$0x1]
    %s36 = sld [smem:[#allocation2]]
    %v37 = vld [vmem:[#allocation3] sm:$0xff]
    %v38 = vld [vmem:[#allocation3 + $0x8] sm:$0xff]
    %v40 = vperm.slane %v35, 0
    %v42 = vmul.f32 %v37, %v40
    %v43 = vmul.f32 %v38, %v40
    %vm44 = vcmask 261120
    %v45 = vsel %vm44, %v42, 0.0
    %46 = vadd.xlane.f32.xlu0 %v45
    %v47 = vpop.xlane.xlu0 %46
    %v48 = vsel %vm44, %v43, 0.0
    %49 = vadd.xlane.f32.xlu0 %v48
    %v50 = vpop.xlane.xlu0 %49
    %v51 = vstv %s36
    %v52 = vadd.f32 %v47, %v51
    %v53 = vadd.f32 %v50, %v51
    %v54 = vtanh.pop %v52
    %v55 = vtanh.pop %v53
    %v58 = vlaneseq
    %v59 = vand.u32 %v58, 127
    %v60 = vperm.slane %v54, %v59
    %v61 = vperm.slane %v55, %v59
    %vm62 = vcmask 1041409
    %v63 = vsel %vm62, %v61, %v60
    %vm65 = vcmask 58368
    %v66 = vsel %vm65, %v63, -inf
    %67 = vmax.xlane.f32.xlu0 %v66
    %v68 = vpop.xlane.xlu0 %67
    %v70 = vperm.slane %v68, 0
    %v71 = vperm.slane %v68, 1
    %v74 = vsub.f32 %v54, %v70
    %v75 = vsub.f32 %v55, %v71
    %v76 = vmul.f32 %v74, 1.442695
    %v77 = vpow.pop %v76
    %v78 = vmul.f32 %v75, 1.442695
    %v79 = vpow.pop %v78
    %82 = vset.pattern.permute.xlu0 0
    %83 = vperm.xlu0 %82, %v77
    %v84 = vpop.permute.xlu0 %83
    %85 = vset.pattern.permute.xlu0 0
    %86 = vperm.xlu0 %85, %v79
    %v87 = vpop.permute.xlu0 %86
    %v88 = vperm.slane %v84, %v59
    %v89 = vperm.slane %v87, %v59
    %v90 = vsel %vm62, %v89, %v88
    %v92 = vsel %vm65, %v90, 0.0
    %93 = vadd.xlane.f32.xlu0 %v92
    %v94 = vpop.xlane.xlu0 %93
    %v95 = vrcp.pop %v94
    %v97 = vperm.slane %v95, 0
    %v98 = vperm.slane %v95, 1
    %v101 = vmul.f32 %v77, %v97
    %v102 = vmul.f32 %v79, %v98
    %104 = vset.pattern.permute.xlu0 0
    %105 = vperm.xlu0 %104, %v101
    %v106 = vpop.permute.xlu0 %105
    %109 = vset.pattern.permute.xlu0 0
    %110 = vperm.xlu0 %109, %v102
    %v111 = vpop.permute.xlu0 %110
    %v113 = vmul.f32 %v37, %v106
    %v114 = vmul.f32 %v38, %v111
    %v115 = vsel %vm44, %v113, 0.0
    %v116 = vrot.slane %v115, 4
    %v117 = vadd.f32 %v115, %v116
    %v118 = vrot.slane %v117, 2
    %v119 = vadd.f32 %v117, %v118
    %v120 = vrot.slane %v119, 1
    %v121 = vadd.f32 %v119, %v120
    %v122 = vsel %vm44, %v114, 0.0
    %v123 = vrot.slane %v122, 4
    %v124 = vadd.f32 %v122, %v123
    %v125 = vrot.slane %v124, 2
    %v126 = vadd.f32 %v124, %v125
    %v127 = vrot.slane %v126, 1
    %v128 = vadd.f32 %v126, %v127
    %v129 = vadd.f32 %v121, 0.0
    %v130 = vadd.f32 %v128, 0.0
    %v133 = vsel %vm62, %v130, %v129
    %vm135 = vcmask 254976
    %136 = vst.msk [vmem:[#allocation6] sm:$0x3] %vm135, %v133
    %v137 = vperm.slane %v106, %v59
    %v138 = vperm.slane %v111, %v59
    %v139 = vsel %vm62, %v138, %v137
    %141 = vst.msk [vmem:[#allocation7] sm:$0x3] %vm65, %v139
    // Predicated region
    $region18: #{tpu_custom_call.1} parent=1 // pred_check
      _
    $region19: #{tpu_custom_call.1} parent=1 // pred_check_branch
      %143 = sbr.rel (0) target = $region21
    $region20: #{tpu_custom_call.1} parent=1 // pred_region
      %145 = vsyncadd [#allocation5], 0
      %s147 = sshll.u32 [#allocation6], 4
      %s148 = int_to_ptr.vmem [resolvable:$true] %s147
      %s149 = sshll.u32 %s3, 4
      %s150 = int_to_ptr.hbm [resolvable:$true] %s149
      %152 = dma.vmem_to_hbm [thread:$0]  %s148, 32, %s150, [#allocation5]
    $region21: #{tpu_custom_call.1} parent=1 // pred_fallthru
      _
    // Predicated region
    $region22: #{tpu_custom_call.1} parent=1 // pred_check
      _
    $region23: #{tpu_custom_call.1} parent=1 // pred_check_branch
      %154 = sbr.rel (0) target = $region25
    $region24: #{tpu_custom_call.1} parent=1 // pred_region
      %156 = vsyncadd [#allocation8], 0
      %s158 = sshll.u32 [#allocation7], 4
      %s159 = int_to_ptr.vmem [resolvable:$true] %s158
      %s160 = sshll.u32 %s4, 4
      %s161 = int_to_ptr.hbm [resolvable:$true] %s160
      %163 = dma.vmem_to_hbm [thread:$0]  %s159, 32, %s161, [#allocation8]
    $region25: #{tpu_custom_call.1} parent=1 // pred_fallthru
      _
    // Predicated region
    $region26: #{tpu_custom_call.1} parent=1 // pred_check
      _
    $region27: #{tpu_custom_call.1} parent=1 // pred_check_branch
      %165 = sbr.rel (0) target = $region29
    $region28: #{tpu_custom_call.1} parent=1 // pred_region
      %167 = dma.done [#allocation5], 32
    $region29: #{tpu_custom_call.1} parent=1 // pred_fallthru
      _
    // Predicated region
    $region30: #{tpu_custom_call.1} parent=1 // pred_check
      _
    $region31: #{tpu_custom_call.1} parent=1 // pred_check_branch
      %169 = sbr.rel (0) target = $region33
    $region32: #{tpu_custom_call.1} parent=1 // pred_region
      %171 = dma.done [#allocation8], 32
    $region33: #{tpu_custom_call.1} parent=1 // pred_fallthru
      _
    %172 = vsyncpa [#allocation4], 1
    %173 = vsyncpa [#allocation5], 1
    %174 = vsyncpa [#allocation8], 1

</llo_original>
